<compile_context>
chip_gen: v7x
topology: tpu7x:2x2x1
jax: 0.10.0
libtpu: 0.0.40
codegen_flags: <defaults>
</compile_context>

<pallas_src>
import functools

import jax
import jax.numpy as jnp
from jax import lax
from jax.experimental import pallas as pl
from jax.experimental.pallas import tpu as pltpu


# --------------------------------------------------------------------------- #
# Small helpers
# --------------------------------------------------------------------------- #
def _apply_act(y, act):
    if act == "relu":
        return jnp.maximum(y, 0.0)
    if act == "relu6":
        return jnp.clip(y, 0.0, 6.0)
    return y


def _sublane_pack(itemsize):
    # Native sublane packing: 8 rows for 4-byte, 16 for 2-byte, 32 for 1-byte.
    return {4: 8, 2: 16, 1: 32}.get(int(itemsize), 8)


def _vmem_budget():
    """(slab budget, vmem_limit_bytes) — conservative unless a 128-MiB part is confirmed."""
    budget, limit = 20 * 1024 * 1024, 48 * 1024 * 1024          # safe on v7x (64 MiB VMEM)
    try:
        cap = int(pltpu.get_tpu_info().vmem_capacity_bytes)
        if cap >= 96 * 1024 * 1024:                              # v5e / v6e: 128 MiB physical
            budget, limit = 64 * 1024 * 1024, 100 * 1024 * 1024
    except Exception:
        pass
    return budget, limit


def _num_tensorcores():
    """2 on megacore / multi-TC parts (v4, v5p, v7x); 1 otherwise (v5e, v6e)."""
    try:
        kind = jax.devices()[0].device_kind.lower()
        if any(tag in kind for tag in ("v4", "v5p", "v7")):
            return 2
    except Exception:
        pass
    return 1


def _channel_candidates(C, pack):
    """Channel-block sizes: multiples of the sublane pack dividing C, plus C itself."""
    return sorted({C} | {cb for cb in range(pack, C, pack) if C % cb == 0}, reverse=True)


def _choose_hw_chunk(HW, N, cb):
    """In-kernel lane-axis chunk so f32 temporaries stay ~<= 2 MiB. Returns (thw, n_chunks)."""
    chunk_budget = 2 * 1024 * 1024
    bytes_per_lane = 12 * N * cb                      # ~3 f32 copies of an (N, cb, 1) column
    if HW % 128 != 0 or bytes_per_lane * HW <= chunk_budget:
        return HW, 1                                  # whole HW in one sweep
    target = max(128, chunk_budget // bytes_per_lane)
    best = 128                                        # 128 always divides HW here
    for t in range(128, HW, 128):
        if HW % t == 0 and t <= target:
            best = t
    return best, HW // best


def _path_a_bytes(N, C, cb, HW, itemsize):
    """VMEM estimate for one Path-A grid step (double-buffered I/O + chunk temps)."""
    thw, _ = _choose_hw_chunk(HW, N, cb)
    io = 4 * N * cb * HW * itemsize                   # in + out, double-buffered
    temps = 12 * N * cb * thw                         # ~3 f32 copies of one chunk
    params = 2 * C * 512                              # resident (1, C, 1) gamma/beta, (8,128)-padded
    return io + temps + params + (1 << 20)            # + misc headroom


def _choose_channel_block(N, C, HW, itemsize, budget, num_tc):
    """Largest Cb fitting the budget; prefer (even) >=2 grid steps on multi-TC parts."""
    cands = _channel_candidates(C, _sublane_pack(itemsize))
    fitting = [cb for cb in cands if _path_a_bytes(N, C, cb, HW, itemsize) <= budget]
    if not fitting:
        return None
    if num_tc >= 2:
        for pred in (lambda cb: (C // cb) >= 2 and (C // cb) % 2 == 0,
                     lambda cb: (C // cb) >= 2):
            for cb in fitting:
                if pred(cb):
                    return cb
    return fitting[0]


def _choose_split_blocks(N, C, HW, itemsize, budget):
    """Path-B blocking: smallest legal channel block + largest fitting 128-multiple HW block."""
    if HW % 128 != 0:
        return None
    cb = _channel_candidates(C, _sublane_pack(itemsize))[-1]
    def tile_bytes(thw):
        return (4 * N * cb * thw * itemsize          # x in + out, double-buffered
                + 8 * N * cb * thw                   # f32 temporaries of one tile
                + 2 * C * 512 + (1 << 20))
    best = None
    for t in range(128, HW, 128):
        if HW % t == 0 and tile_bytes(t) <= budget:
            best = t
    if best is None:
        return None
    return cb, best


# --------------------------------------------------------------------------- #
# Path A kernel: whole-HW channel block, chunked stats + chunked normalize
# --------------------------------------------------------------------------- #
def _bn_kernel_full(gamma_ref, beta_ref, x_ref, o_ref, *,
                    eps, act, inv_n, cb, c_total, thw, n_chunks):
    def chunk(i):
        if n_chunks == 1:
            return x_ref[...]
        off = pl.multiple_of(i * thw, thw)
        return x_ref[:, :, pl.ds(off, thw)]

    # Per-channel shift (first element) guards E[x^2]-mean^2 against cancellation.
    shift = x_ref[0:1, :, 0:1].astype(jnp.float32)                     # (1, cb, 1)

    # Pass 1: per-channel sum / sum-of-squares (f32 accumulation), chunked over HW.
    def stats_step(i, carry):
        s, sq = carry
        d = chunk(i).astype(jnp.float32) - shift
        return (s + jnp.sum(d, axis=(0, 2), keepdims=True),
                sq + jnp.sum(d * d, axis=(0, 2), keepdims=True))

    zeros = jnp.zeros((1, cb, 1), jnp.float32)
    if n_chunks == 1:
        s, sq = stats_step(0, (zeros, zeros))
    else:
        s, sq = lax.fori_loop(0, n_chunks, stats_step, (zeros, zeros))

    dmean = s * inv_n
    mean = shift + dmean
    var = jnp.maximum(sq * inv_n - dmean * dmean, 0.0)                 # biased variance
    inv_std = lax.rsqrt(var + eps)

    if cb == c_total:
        gamma = gamma_ref[...].astype(jnp.float32)
        beta = beta_ref[...].astype(jnp.float32)
    else:
        c0 = pl.multiple_of(pl.program_id(0) * cb, cb)
        gamma = gamma_ref[:, pl.ds(c0, cb), :].astype(jnp.float32)
        beta = beta_ref[:, pl.ds(c0, cb), :].astype(jnp.float32)
    a = gamma * inv_std                                                # (1, cb, 1)
    b = beta - mean * a                                                # (1, cb, 1)

    # Pass 2: fused normalize + affine (+ activation) sweep, chunked over HW.
    def norm_step(i, carry):
        y = _apply_act(chunk(i).astype(jnp.float32) * a + b, act)
        if n_chunks == 1:
            o_ref[...] = y.astype(o_ref.dtype)
        else:
            off = pl.multiple_of(i * thw, thw)
            o_ref[:, :, pl.ds(off, thw)] = y.astype(o_ref.dtype)
        return carry

    if n_chunks == 1:
        norm_step(0, 0)
    else:
        lax.fori_loop(0, n_chunks, norm_step, 0)


def _bn_full_hw(x2, g2, b2, N, C, HW, cb, eps, act, vmem_limit):
    itemsize = x2.dtype.itemsize
    thw, n_chunks = _choose_hw_chunk(HW, N, cb)
    kernel = functools.partial(_bn_kernel_full, eps=eps, act=act,
                               inv_n=1.0 / float(N * HW), cb=cb, c_total=C,
                               thw=thw, n_chunks=n_chunks)
    cost = pl.CostEstimate(flops=7 * N * C * HW, transcendentals=C,
                           bytes_accessed=2 * N * C * HW * itemsize)
    return pl.pallas_call(
        kernel,
        out_shape=jax.ShapeDtypeStruct((N, C, HW), x2.dtype),
        grid=(C // cb,),
        in_specs=[
            pl.BlockSpec((1, C, 1), lambda c: (0, 0, 0)),      # gamma: resident, DMA'd once
            pl.BlockSpec((1, C, 1), lambda c: (0, 0, 0)),      # beta : resident, DMA'd once
            pl.BlockSpec((N, cb, HW), lambda c: (0, c, 0)),    # x channel-block slab
        ],
        out_specs=pl.BlockSpec((N, cb, HW), lambda c: (0, c, 0)),
        compiler_params=pltpu.CompilerParams(
            dimension_semantics=("parallel",),
            vmem_limit_bytes=vmem_limit),
        cost_estimate=cost,
    )(g2, b2, x2)


# --------------------------------------------------------------------------- #
# Path B kernel: HW-split two-pass (stats-accumulate steps, then normalize steps)
# --------------------------------------------------------------------------- #
def _bn_kernel_split(gamma_ref, beta_ref, x_ref, o_ref,
                     s_ref, sq_ref, k_ref, a_ref, b_ref, *,
                     eps, act, inv_n, cb, c_total, n_hw):
    j = pl.program_id(1)

    @pl.when(j == 0)
    def _():
        s_ref[...] = jnp.zeros_like(s_ref)
        sq_ref[...] = jnp.zeros_like(sq_ref)
        k_ref[...] = x_ref[0:1, :, 0:1].astype(jnp.float32)    # per-channel shift

    @pl.when(j < n_hw)
    def _():
        d = x_ref[...].astype(jnp.float32) - k_ref[...]
        s_ref[...] += jnp.sum(d, axis=(0, 2), keepdims=True)
        sq_ref[...] += jnp.sum(d * d, axis=(0, 2), keepdims=True)

    @pl.when(j == n_hw - 1)
    def _():
        dmean = s_ref[...] * inv_n
        mean = k_ref[...] + dmean
        var = jnp.maximum(sq_ref[...] * inv_n - dmean * dmean, 0.0)
        inv_std = lax.rsqrt(var + eps)
        if cb == c_total:
            gamma = gamma_ref[...].astype(jnp.float32)
            beta = beta_ref[...].astype(jnp.float32)
        else:
            c0 = pl.multiple_of(pl.program_id(0) * cb, cb)
            gamma = gamma_ref[:, pl.ds(c0, cb), :].astype(jnp.float32)
            beta = beta_ref[:, pl.ds(c0, cb), :].astype(jnp.float32)
        a_ref[...] = gamma * inv_std
        b_ref[...] = beta - mean * (gamma * inv_std)

    @pl.when(j >= n_hw)
    def _():
        y = x_ref[...].astype(jnp.float32) * a_ref[...] + b_ref[...]
        o_ref[...] = _apply_act(y, act).astype(o_ref.dtype)


def _bn_split_hw(x2, g2, b2, N, C, HW, cb, thw, eps, act, vmem_limit):
    itemsize = x2.dtype.itemsize
    n_hw = HW // thw
    kernel = functools.partial(_bn_kernel_split, eps=eps, act=act,
                               inv_n=1.0 / float(N * HW), cb=cb, c_total=C,
                               n_hw=n_hw)
    cost = pl.CostEstimate(flops=7 * N * C * HW, transcendentals=C,
                           bytes_accessed=3 * N * C * HW * itemsize)
    return pl.pallas_call(
        kernel,
        out_shape=jax.ShapeDtypeStruct((N, C, HW), x2.dtype),
        grid=(C // cb, 2 * n_hw),
        in_specs=[
            pl.BlockSpec((1, C, 1), lambda c, j: (0, 0, 0)),
            pl.BlockSpec((1, C, 1), lambda c, j: (0, 0, 0)),
            pl.BlockSpec((N, cb, thw), lambda c, j: (0, c, j % n_hw)),
        ],
        out_specs=pl.BlockSpec(
            (N, cb, thw), lambda c, j: (0, c, jnp.maximum(j - n_hw, 0))),
        scratch_shapes=[pltpu.VMEM((1, cb, 1), jnp.float32)] * 5,
        compiler_params=pltpu.CompilerParams(
            dimension_semantics=("parallel", "arbitrary"),
            vmem_limit_bytes=vmem_limit),
        cost_estimate=cost,
    )(g2, b2, x2)


# --------------------------------------------------------------------------- #
# Public wrapper
# --------------------------------------------------------------------------- #
def batch_norm(x, gamma, beta, *, eps=1e-5, act=None, force_split=False):
    """Pallas BatchNorm2d forward (batch statistics, affine, opt. relu/relu6), NCHW."""
    if act is not None and act not in ("relu", "relu6"):
        raise ValueError(f"unsupported activation: {act!r}")

    N, C, H, W = x.shape
    HW = H * W
    x2 = x.reshape(N, C, HW)                     # free reshape -> lane-dense layout
    g2 = jnp.asarray(gamma).reshape(1, C, 1)
    b2 = jnp.asarray(beta).reshape(1, C, 1)
    itemsize = x.dtype.itemsize

    budget, vmem_limit = _vmem_budget()
    num_tc = _num_tensorcores()

    cb = None
    if not force_split:
        cb = _choose_channel_block(N, C, HW, itemsize, budget, num_tc)

    if cb is not None:
        out = _bn_full_hw(x2, g2, b2, N, C, HW, cb, eps, act, vmem_limit)
    else:
        split = _choose_split_blocks(N, C, HW, itemsize, budget)
        if split is None:
            # TODO(synk): no lane-aligned spatial split exists (HW not a multiple of
            # 128); fall back to best-effort whole-HW blocking with the smallest block.
            cb_min = _channel_candidates(C, _sublane_pack(itemsize))[-1]
            out = _bn_full_hw(x2, g2, b2, N, C, HW, cb_min, eps, act, vmem_limit)
        else:
            cb_s, thw = split
            out = _bn_split_hw(x2, g2, b2, N, C, HW, cb_s, thw, eps, act, vmem_limit)

    return out.reshape(N, C, H, W)


def batch_norm_ref(x, gamma, beta, *, eps=1e-5, act=None):
    """Pure-JAX reference for correctness checking."""
    xf = x.astype(jnp.float32)
    mean = jnp.mean(xf, axis=(0, 2, 3), keepdims=True)
    var = jnp.mean((xf - mean) ** 2, axis=(0, 2, 3), keepdims=True)
    y = (xf - mean) / jnp.sqrt(var + eps)
    y = y * gamma[None, :, None, None] + beta[None, :, None, None]
    y = _apply_act(y, act)
    return y.astype(x.dtype)


if __name__ == "__main__":
    key = jax.random.PRNGKey(0)
    N, C, H, W = 2, 4, 16, 16
    kx, kg, kb = jax.random.split(key, 3)
    # Un-centered input to exercise the shifted-moments (cancellation-safe) path.
    x = jax.random.normal(kx, (N, C, H, W), dtype=jnp.float32) * 1.5 + 2.0

    # BatchNorm2d default init is weight=1, bias=0; the module also allows custom
    # initializers via param_attr/bias_attr, so test with non-trivial values.
    gamma = 1.0 + 0.1 * jax.random.normal(kg, (C,), dtype=jnp.float32)
    beta = 0.1 * jax.random.normal(kb, (C,), dtype=jnp.float32)

    # Main path (Path A: whole-HW channel blocks).
    act = "relu"
    out = jax.block_until_ready(batch_norm(x, gamma, beta, eps=1e-5, act=act))
    ref = batch_norm_ref(x, gamma, beta, eps=1e-5, act=act)
    assert out.shape == (N, C, H, W) and out.dtype == x.dtype
    assert jnp.allclose(out, ref, atol=1e-4, rtol=1e-4), "Path A mismatch vs reference"

    # Fallback path (Path B: HW-split two-pass accumulator), forced at small shape.
    out2 = jax.block_until_ready(
        batch_norm(x, gamma, beta, eps=1e-5, act="relu6", force_split=True))
    ref2 = batch_norm_ref(x, gamma, beta, eps=1e-5, act="relu6")
    assert jnp.allclose(out2, ref2, atol=1e-4, rtol=1e-4), "Path B mismatch vs reference"

    print("KERNEL_OK")
</pallas_src>

<mosaic_0001>
module attributes {stable_mosaic.version = 11 : i64} {
  func.func @_bn_kernel_full(%arg0: i32, %arg1: memref<1x4x1xf32, #tpu.memory_space<vmem>>, %arg2: memref<1x4x1xf32, #tpu.memory_space<vmem>>, %arg3: memref<2x4x256xf32, #tpu.memory_space<vmem>>, %arg4: memref<2x4x256xf32, #tpu.memory_space<vmem>>) attributes {dimension_semantics = [#tpu.dimension_semantics<parallel>], iteration_bounds = array<i64: 1>, scalar_prefetch = 0 : i64, scratch_operands = 0 : i64, tpu.core_type = #tpu.core_type<tc>, window_params = [{pipeline_mode = #tpu.pipeline_mode<synchronous>, transform_indices = @transform_0, window_bounds = array<i64: 1, 4, 1>}, {pipeline_mode = #tpu.pipeline_mode<synchronous>, transform_indices = @transform_1, window_bounds = array<i64: 1, 4, 1>}, {transform_indices = @transform_2, window_bounds = array<i64: 2, 4, 256>}, {transform_indices = @transform_3, window_bounds = array<i64: 2, 4, 256>}]} {
    %c0 = arith.constant 0 : index
    %c0_0 = arith.constant 0 : index
    %c0_1 = arith.constant 0 : index
    %0 = vector.load %arg3[%c0, %c0_0, %c0_1] : memref<2x4x256xf32, #tpu.memory_space<vmem>>, vector<1x4x1xf32>
    %cst = arith.constant 0.000000e+00 : f32
    %1 = vector.broadcast %cst : f32 to vector<1x4x1xf32>
    %c0_2 = arith.constant 0 : index
    %c0_3 = arith.constant 0 : index
    %c0_4 = arith.constant 0 : index
    %2 = vector.load %arg3[%c0_2, %c0_3, %c0_4] : memref<2x4x256xf32, #tpu.memory_space<vmem>>, vector<2x4x256xf32>
    %3 = vector.broadcast %0 : vector<1x4x1xf32> to vector<2x4x256xf32>
    %4 = arith.subf %2, %3 : vector<2x4x256xf32>
    %cst_5 = arith.constant dense<0.000000e+00> : vector<4xf32>
    %5 = vector.multi_reduction <add>, %4, %cst_5 [0, 2] : vector<2x4x256xf32> to vector<4xf32>
    %6 = vector.shape_cast %5 : vector<4xf32> to vector<1x4x1xf32>
    %7 = arith.addf %1, %6 : vector<1x4x1xf32>
    %8 = arith.mulf %4, %4 : vector<2x4x256xf32>
    %cst_6 = arith.constant dense<0.000000e+00> : vector<4xf32>
    %9 = vector.multi_reduction <add>, %8, %cst_6 [0, 2] : vector<2x4x256xf32> to vector<4xf32>
    %10 = vector.shape_cast %9 : vector<4xf32> to vector<1x4x1xf32>
    %11 = arith.addf %1, %10 : vector<1x4x1xf32>
    %cst_7 = arith.constant 0.001953125 : f32
    %12 = vector.broadcast %cst_7 : f32 to vector<1x4x1xf32>
    %13 = arith.mulf %7, %12 : vector<1x4x1xf32>
    %14 = arith.addf %0, %13 : vector<1x4x1xf32>
    %cst_8 = arith.constant 0.001953125 : f32
    %15 = vector.broadcast %cst_8 : f32 to vector<1x4x1xf32>
    %16 = arith.mulf %11, %15 : vector<1x4x1xf32>
    %17 = arith.mulf %13, %13 : vector<1x4x1xf32>
    %18 = arith.subf %16, %17 : vector<1x4x1xf32>
    %cst_9 = arith.constant 0.000000e+00 : f32
    %19 = vector.broadcast %cst_9 : f32 to vector<1x4x1xf32>
    %20 = arith.maximumf %18, %19 : vector<1x4x1xf32>
    %cst_10 = arith.constant 9.99999974E-6 : f32
    %21 = vector.broadcast %cst_10 : f32 to vector<1x4x1xf32>
    %22 = arith.addf %20, %21 : vector<1x4x1xf32>
    %23 = math.rsqrt %22 : vector<1x4x1xf32>
    %c0_11 = arith.constant 0 : index
    %c0_12 = arith.constant 0 : index
    %c0_13 = arith.constant 0 : index
    %24 = vector.load %arg1[%c0_11, %c0_12, %c0_13] : memref<1x4x1xf32, #tpu.memory_space<vmem>>, vector<1x4x1xf32>
    %c0_14 = arith.constant 0 : index
    %c0_15 = arith.constant 0 : index
    %c0_16 = arith.constant 0 : index
    %25 = vector.load %arg2[%c0_14, %c0_15, %c0_16] : memref<1x4x1xf32, #tpu.memory_space<vmem>>, vector<1x4x1xf32>
    %26 = arith.mulf %24, %23 : vector<1x4x1xf32>
    %27 = arith.mulf %14, %26 : vector<1x4x1xf32>
    %28 = arith.subf %25, %27 : vector<1x4x1xf32>
    %c0_17 = arith.constant 0 : index
    %c0_18 = arith.constant 0 : index
    %c0_19 = arith.constant 0 : index
    %29 = vector.load %arg3[%c0_17, %c0_18, %c0_19] : memref<2x4x256xf32, #tpu.memory_space<vmem>>, vector<2x4x256xf32>
    %30 = vector.broadcast %26 : vector<1x4x1xf32> to vector<2x4x256xf32>
    %31 = arith.mulf %29, %30 : vector<2x4x256xf32>
    %32 = vector.broadcast %28 : vector<1x4x1xf32> to vector<2x4x256xf32>
    %33 = arith.addf %31, %32 : vector<2x4x256xf32>
    %cst_20 = arith.constant 0.000000e+00 : f32
    %34 = vector.broadcast %cst_20 : f32 to vector<2x4x256xf32>
    %35 = arith.maximumf %33, %34 : vector<2x4x256xf32>
    %c0_21 = arith.constant 0 : index
    %c0_22 = arith.constant 0 : index
    %c0_23 = arith.constant 0 : index
    %36 = vector.load %arg4[%c0_21, %c0_22, %c0_23] : memref<2x4x256xf32, #tpu.memory_space<vmem>>, vector<2x4x256xf32>
    tpu.vector_store %arg4[%c0_21, %c0_22, %c0_23], %35 {strides = array<i32>} : memref<2x4x256xf32, #tpu.memory_space<vmem>>, vector<2x4x256xf32>,
    return
  }
  func.func @transform_0(%arg0: i32) -> (i32, i32, i32) {
    %c0_i32 = arith.constant 0 : i32
    %c0_i32_0 = arith.constant 0 : i32
    %c0_i32_1 = arith.constant 0 : i32
    %c0_i32_2 = arith.constant 0 : i32
    return %c0_i32, %c0_i32_0, %c0_i32_1 : i32, i32, i32
  }
  func.func @transform_1(%arg0: i32) -> (i32, i32, i32) {
    %c0_i32 = arith.constant 0 : i32
    %c0_i32_0 = arith.constant 0 : i32
    %c0_i32_1 = arith.constant 0 : i32
    %c0_i32_2 = arith.constant 0 : i32
    return %c0_i32, %c0_i32_0, %c0_i32_1 : i32, i32, i32
  }
  func.func @transform_2(%arg0: i32) -> (i32, i32, i32) {
    %c0_i32 = arith.constant 0 : i32
    %c0_i32_0 = arith.constant 0 : i32
    %c0_i32_1 = arith.constant 0 : i32
    return %c0_i32, %arg0, %c0_i32_0 : i32, i32, i32
  }
  func.func @transform_3(%arg0: i32) -> (i32, i32, i32) {
    %c0_i32 = arith.constant 0 : i32
    %c0_i32_0 = arith.constant 0 : i32
    %c0_i32_1 = arith.constant 0 : i32
    return %c0_i32, %arg0, %c0_i32_0 : i32, i32, i32
  }
}

</mosaic_0001>

<llo_original>
// kernel: tpu_custom_call.1
$region0: #{tpu_custom_call.1}
  #allocation0 [shape = 'u32[]', space=smem, size = 0x4, offset = 0x4, fixed_abs, tag = 'smem constant byte address 0x4 - core index']
  #allocation1 [shape = 'u32[144,128]{1,0:T(1,128)}', space=vmem, size = 0x12000, scoped, tag = 'internal scratch']
  %s0 = inlined_call_operand.vmem [shape: f32[1,4,1], index: 0, kind: input, shape index: {}]
  %s1 = inlined_call_operand.vmem [shape: f32[1,4,1], index: 1, kind: input, shape index: {}]
  %s2 = inlined_call_operand.vmem [shape: f32[2,4,256], index: 2, kind: input, shape index: {}]
  %s3 = inlined_call_operand.hbm [shape: f32[2,4,256], index: 3, kind: output, shape index: {}]
  %s4 = sld [smem:[#allocation0]]
  $region22: #{tpu_custom_call.1} parent=0
    _
  %s6 = ssub.s32 1, %s4
  %s7 = scalar_select 0, %s6, %s4
  $region1: #{tpu_custom_call.1} parent=0
    #allocation2 [shape = 'u8[8192]{0}', space=vmem, size = 0x2000, scoped, tag = 'output window, operand 0, single buffered']
    #allocation3 [shape = 's32[1]{0}', space=sflag, size = 0x4, scoped, tag = 'scoped memory for tpu_custom_call.1']
    %8 = vsyncpa [#allocation3], 0
    // Predicated region
    $region2: #{tpu_custom_call.1} parent=1 // pred_check
      _
    $region3: #{tpu_custom_call.1} parent=1 // pred_check_branch
      %10 = sbr.rel (0) target = $region5
    $region4: #{tpu_custom_call.1} parent=1 // pred_region
      _
    $region5: #{tpu_custom_call.1} parent=1 // pred_fallthru
      _
    // Predicated region
    $region6: #{tpu_custom_call.1} parent=1 // pred_check
      _
    $region7: #{tpu_custom_call.1} parent=1 // pred_check_branch
      %12 = sbr.rel (0) target = $region9
    $region8: #{tpu_custom_call.1} parent=1 // pred_region
      _
    $region9: #{tpu_custom_call.1} parent=1 // pred_fallthru
      _
    // Predicated region
    $region10: #{tpu_custom_call.1} parent=1 // pred_check
      _
    $region11: #{tpu_custom_call.1} parent=1 // pred_check_branch
      %14 = sbr.rel (0) target = $region13
    $region12: #{tpu_custom_call.1} parent=1 // pred_region
      _
    $region13: #{tpu_custom_call.1} parent=1 // pred_fallthru
      _
    %v15 = vld [vmem:[%s2] sm:$0xf]
    %v16 = vld [vmem:[%s2] sm:$0xff]
    %v17 = vld [vmem:[%s2 + $0x8] sm:$0xff]
    %19 = vset.pattern.permute.xlu0 0
    %20 = vperm.xlu0 %19, %v15
    %v21 = vpop.permute.xlu0 %20
    %v24 = vunpack.c.l.s4 839922192
    %v25 = vunpack.c.0.s8 %v24
    %v26 = vlaneseq
    %v27 = vshrl.u32 %v26, 7
    %v28 = vsub.s32 %v25, %v27
    %v29 = vrot.slane %v21, %v28
    %v30 = vsub.f32 %v16, %v29
    %v31 = vsub.f32 %v17, %v29
    %v34 = vcombine.high %v30, %v30
    %v35 = vcombine.high %v31, %v31
    %vm38 = vcmask 1043456
    %v39 = vsel %vm38, %v30, 0.0
    %v40 = vsel %vm38, %v34, 0.0
    %v41 = vadd.f32 %v39, %v40
    %v42 = vsel %vm38, %v31, 0.0
    %v43 = vadd.f32 %v41, %v42
    %v44 = vsel %vm38, %v35, 0.0
    %v45 = vadd.f32 %v43, %v44
    %46 = vadd.xlane.f32.xlu0 %v45
    %v47 = vpop.xlane.xlu0 %46
    %v48 = vadd.f32 %v47, 0.0
    %v49 = vmul.f32 %v30, %v30
    %v50 = vmul.f32 %v31, %v31
    %v53 = vcombine.high %v49, %v49
    %v54 = vcombine.high %v50, %v50
    %v57 = vsel %vm38, %v49, 0.0
    %v58 = vsel %vm38, %v53, 0.0
    %v59 = vadd.f32 %v57, %v58
    %v60 = vsel %vm38, %v50, 0.0
    %v61 = vadd.f32 %v59, %v60
    %v62 = vsel %vm38, %v54, 0.0
    %v63 = vadd.f32 %v61, %v62
    %64 = vadd.xlane.f32.xlu0 %v63
    %v65 = vpop.xlane.xlu0 %64
    %v66 = vadd.f32 %v65, 0.0
    %v67 = vmul.f32 %v48, 0.001953125
    %v68 = vadd.f32 %v15, %v67
    %v69 = vmul.f32 %v66, 0.001953125
    %v70 = vmul.f32 %v67, %v67
    %v71 = vsub.f32 %v69, %v70
    %v72 = vmax.f32 %v71, 0.0
    %v73 = vadd.f32 %v72, 1e-05
    %v74 = vrsqrt.pop %v73
    %v75 = vld [vmem:[%s0] sm:$0xf]
    %v76 = vld [vmem:[%s1] sm:$0xf]
    %v77 = vmul.f32 %v75, %v74
    %v78 = vmul.f32 %v68, %v77
    %v79 = vsub.f32 %v76, %v78
    %81 = vset.pattern.permute.xlu0 0
    %82 = vperm.xlu0 %81, %v77
    %v83 = vpop.permute.xlu0 %82
    %v85 = vunpack.c.l.s4 839922192
    %v86 = vunpack.c.0.s8 %v85
    %v87 = vlaneseq
    %v88 = vshrl.u32 %v87, 7
    %v89 = vsub.s32 %v86, %v88
    %v90 = vrot.slane %v83, %v89
    %v92 = vmul.f32 %v16, %v90
    %v93 = vmul.f32 %v17, %v90
    %95 = vset.pattern.permute.xlu0 0
    %96 = vperm.xlu0 %95, %v79
    %v97 = vpop.permute.xlu0 %96
    %v99 = vunpack.c.l.s4 839922192
    %v100 = vunpack.c.0.s8 %v99
    %v101 = vlaneseq
    %v102 = vshrl.u32 %v101, 7
    %v103 = vsub.s32 %v100, %v102
    %v104 = vrot.slane %v97, %v103
    %v106 = vadd.f32 %v92, %v104
    %v107 = vadd.f32 %v93, %v104
    %v108 = vmax.f32 %v106, 0.0
    %v109 = vmax.f32 %v107, 0.0
    %110 = vst [vmem:[#allocation2] sm:$0xff] %v108
    %111 = vst [vmem:[#allocation2 + $0x8] sm:$0xff] %v109
    // Predicated region
    $region14: #{tpu_custom_call.1} parent=1 // pred_check
      _
    $region15: #{tpu_custom_call.1} parent=1 // pred_check_branch
      %113 = sbr.rel (0) target = $region17
    $region16: #{tpu_custom_call.1} parent=1 // pred_region
      %s115 = ssub.s32 256, 256
      %116 = vsyncadd [#allocation3], %s115
      %s117 = sshll.u32 [#allocation2], 4
      %s118 = int_to_ptr.vmem [resolvable:$true] %s117
      %123 = dma.vmem_to_hbm [thread:$0]  %s118, 256, %s3, [#allocation3], 128, 128, 8
    $region17: #{tpu_custom_call.1} parent=1 // pred_fallthru
      _
    // Predicated region
    $region18: #{tpu_custom_call.1} parent=1 // pred_check
      _
    $region19: #{tpu_custom_call.1} parent=1 // pred_check_branch
      %125 = sbr.rel (0) target = $region21
    $region20: #{tpu_custom_call.1} parent=1 // pred_region
      %126 = dma.done [#allocation3], 256
    $region21: #{tpu_custom_call.1} parent=1 // pred_fallthru
      _
    %127 = vsyncpa [#allocation3], 1

</llo_original>
